<compile_context>
chip_gen: v7x
topology: tpu7x:2x2x1
jax: 0.10.0
libtpu: 0.0.40
codegen_flags: <defaults>
</compile_context>

<pallas_src>
import numpy as np

import jax
import jax.numpy as jnp
from jax.experimental import pallas as pl
from jax.experimental.pallas import tpu as pltpu


# ---------------------------------------------------------------------------
# Kernels
# ---------------------------------------------------------------------------

def _rowwise_select_kernel(x_ref, m_ref, o_ref):
    """out = x @ M with M a constant one-hot selection matrix (exact gather on MXU).

    x_ref: (TR, G*W_in)   m_ref: (G*W_in, G*s_h*W_out)   o_ref: (TR, G*s_h*W_out)
    """
    o_ref[...] = jnp.dot(
        x_ref[...], m_ref[...], preferred_element_type=jnp.float32
    ).astype(o_ref.dtype)


def _general_select_kernel(x_ref, mh_ref, mw_ref, o_ref):
    """Fallback for non-integer ratios: out[b] = MH @ x[b] @ MW (hoisted one-hots)."""
    xb = x_ref[...]                      # (TB, H_in, W_in), native dtype
    mh = mh_ref[...]                     # (H_out, H_in)
    mw = mw_ref[...]                     # (W_in, W_out)
    for b in range(xb.shape[0]):         # static, small unroll (TB <= 8)
        rows = jnp.dot(mh, xb[b], preferred_element_type=jnp.float32)
        rows = rows.astype(xb.dtype)     # exact: each row is a pure copy of an input row
        o_ref[b] = jnp.dot(rows, mw, preferred_element_type=jnp.float32).astype(o_ref.dtype)


# ---------------------------------------------------------------------------
# Host-side helpers
# ---------------------------------------------------------------------------

def _resolve_out_size(h_in, w_in, size, scale_factor):
    if size is not None:
        if isinstance(size, (tuple, list)):
            return int(size[0]), int(size[1])
        return int(size), int(size)
    if scale_factor is None:
        raise ValueError("either size or scale_factor must be given")
    if isinstance(scale_factor, (tuple, list)):
        sh, sw = scale_factor
    else:
        sh = sw = scale_factor
    return int(h_in * sh), int(w_in * sw)


def _pick_row_fusion(total_rows, out_row_elems, max_g=8):
    """Smallest G dividing total_rows that makes fused output rows lane-dense."""
    reach = 1
    for g in range(1, max_g + 1):
        if total_rows % g:
            continue
        width = g * out_row_elems
        if width % 128 == 0:
            return g
        if reach == 1 and out_row_elems < 128 and width >= 128:
            reach = g
    return reach


def _pick_block_rows(total_rows, row_bytes, target_bytes=1 << 20):
    """Largest divisor of total_rows giving ~target_bytes output per grid step.

    Block's second-to-last dim must be a multiple of 8 or equal the full dim;
    ~1 MiB blocks (double-buffered in+out) stay well under the default scoped
    VMEM limit on v5e/v6e/v7x.
    """
    target = max(8, target_bytes // max(1, row_bytes))
    if total_rows <= target:
        return total_rows
    best = 0
    d = 1
    while d * d <= total_rows:
        if total_rows % d == 0:
            for cand in (d, total_rows // d):
                if cand <= target and cand % 8 == 0 and cand > best:
                    best = cand
        d += 1
    return best if best else total_rows


# ---------------------------------------------------------------------------
# Fast path: integer scale factors (covers scale_factor usage)
# ---------------------------------------------------------------------------

def _nearest_integer_scale(x, s_h, s_w):
    n, c, h_in, w_in = x.shape
    h_out, w_out = h_in * s_h, w_in * s_w
    dt = x.dtype
    itemsize = x.dtype.itemsize

    # One-hot W gather (W_in, W_out), tiled s_h times so one dot also performs the
    # H replication through the free output reshape (built once, hoisted).
    src_w = (np.arange(w_out) * w_in) // w_out                       # == w // s_w
    base = (np.arange(w_in)[:, None] == src_w[None, :]).astype(np.float32)
    m = np.tile(base, (1, s_h))                                      # (W_in, L), L = s_h*W_out

    total_rows = n * c * h_in
    l_elems = s_h * w_out
    g = _pick_row_fusion(total_rows, l_elems)
    m_g = np.kron(np.eye(g, dtype=np.float32), m)                    # (G*W_in, G*L) block-diag

    r_f = total_rows // g
    gw = g * w_in
    l_f = g * l_elems

    x2 = x.reshape(r_f, gw)                                          # contiguous -> free view
    m_dev = jnp.asarray(m_g, dtype=dt)                               # native dtype, exact

    tr = _pick_block_rows(r_f, l_f * itemsize)
    grid = (r_f // tr,)

    cost = pl.CostEstimate(
        flops=2 * r_f * gw * l_f,
        transcendentals=0,
        bytes_accessed=(r_f * gw + r_f * l_f + gw * l_f) * itemsize,
    )

    out2 = pl.pallas_call(
        _rowwise_select_kernel,
        out_shape=jax.ShapeDtypeStruct((r_f, l_f), dt),
        grid_spec=pltpu.PrefetchScalarGridSpec(
            num_scalar_prefetch=0,
            grid=grid,
            in_specs=[
                pl.BlockSpec((tr, gw), lambda i: (i, 0)),            # batched planes/rows
                pl.BlockSpec((gw, l_f), lambda i: (0, 0)),           # constant selection matrix
            ],
            out_specs=pl.BlockSpec((tr, l_f), lambda i: (i, 0)),     # lane-dense output rows
        ),
        compiler_params=pltpu.CompilerParams(
            dimension_semantics=("parallel",),
        ),
        cost_estimate=cost,
    )(x2, m_dev)

    return out2.reshape(n, c, h_out, w_out)                          # free view


# ---------------------------------------------------------------------------
# General path: arbitrary output size (non-integer ratios, downsampling)
# ---------------------------------------------------------------------------

def _nearest_general(x, h_out, w_out):
    n, c, h_in, w_in = x.shape
    nc = n * c
    dt = x.dtype

    # src = floor(dst * in / out) in exact integer math; PyTorch evaluates the same
    # formula with a float ratio, which can differ by one index at a few positions
    # for some non-integer ratios.
    src_h = (np.arange(h_out) * h_in) // h_out
    src_w = (np.arange(w_out) * w_in) // w_out
    mh = (src_h[:, None] == np.arange(h_in)[None, :]).astype(np.float32)   # (H_out, H_in)
    mw = (np.arange(w_in)[:, None] == src_w[None, :]).astype(np.float32)   # (W_in, W_out)

    tb = 1
    for cand in (8, 4, 2, 1):
        if nc % cand == 0:
            tb = cand
            break

    x_p = x.reshape(nc, h_in, w_in)
    out = pl.pallas_call(
        _general_select_kernel,
        out_shape=jax.ShapeDtypeStruct((nc, h_out, w_out), dt),
        grid_spec=pltpu.PrefetchScalarGridSpec(
            num_scalar_prefetch=0,
            grid=(nc // tb,),
            in_specs=[
                pl.BlockSpec((tb, h_in, w_in), lambda i: (i, 0, 0)),
                pl.BlockSpec((h_out, h_in), lambda i: (0, 0)),       # hoisted constants
                pl.BlockSpec((w_in, w_out), lambda i: (0, 0)),
            ],
            out_specs=pl.BlockSpec((tb, h_out, w_out), lambda i: (i, 0, 0)),
        ),
        compiler_params=pltpu.CompilerParams(
            dimension_semantics=("parallel",),
        ),
    )(x_p, jnp.asarray(mh, dtype=dt), jnp.asarray(mw, dtype=dt))

    return out.reshape(n, c, h_out, w_out)


# ---------------------------------------------------------------------------
# Public API (mirrors the PyTorch module)
# ---------------------------------------------------------------------------

def nearest_interpolate(x, size=None, scale_factor=None):
    """x: (N, C, H, W) -> (N, C, H_out, W_out), nearest-neighbor (F.interpolate default)."""
    _, _, h_in, w_in = x.shape
    h_out, w_out = _resolve_out_size(h_in, w_in, size, scale_factor)
    if h_out == h_in and w_out == w_in:
        return x
    if h_out % h_in == 0 and w_out % w_in == 0:
        return _nearest_integer_scale(x, h_out // h_in, w_out // w_in)
    return _nearest_general(x, h_out, w_out)


class NearestInterpolate:
    """Analogue of the PyTorch NearestInterpolate module."""

    def __init__(self, size=None, scale_factor=None):
        self.size = size
        self.scale_factor = scale_factor

    def __call__(self, x):
        return nearest_interpolate(x, size=self.size, scale_factor=self.scale_factor)


def _nearest_reference(x, h_out, w_out):
    h_in, w_in = x.shape[2], x.shape[3]
    src_h = (jnp.arange(h_out) * h_in) // h_out
    src_w = (jnp.arange(w_out) * w_in) // w_out
    return x[:, :, src_h][:, :, :, src_w]


if __name__ == "__main__":
    key = jax.random.PRNGKey(0)
    x = jax.random.normal(key, (2, 4, 16, 16), dtype=jnp.float32)

    # Fast path: NearestInterpolate(scale_factor=2) forward
    up = NearestInterpolate(scale_factor=2)
    y = jax.block_until_ready(up(x))
    assert y.shape == (2, 4, 32, 32), y.shape
    assert jnp.array_equal(y, _nearest_reference(x, 32, 32)), "integer-scale mismatch"

    # General path: explicit size with non-integer ratios
    y2 = jax.block_until_ready(nearest_interpolate(x, size=(24, 20)))
    assert y2.shape == (2, 4, 24, 20), y2.shape
    assert jnp.array_equal(y2, _nearest_reference(x, 24, 20)), "general-size mismatch"

    print("KERNEL_OK")
</pallas_src>

<mosaic_0001>
module attributes {stable_mosaic.version = 11 : i64} {
  func.func @_rowwise_select_kernel(%arg0: i32, %arg1: memref<64x32xf32, #tpu.memory_space<vmem>>, %arg2: memref<32x128xf32, #tpu.memory_space<vmem>>, %arg3: memref<64x128xf32, #tpu.memory_space<vmem>>) attributes {dimension_semantics = [#tpu.dimension_semantics<parallel>], iteration_bounds = array<i64: 1>, scalar_prefetch = 0 : i64, scratch_operands = 0 : i64, tpu.core_type = #tpu.core_type<tc>, window_params = [{transform_indices = @transform_0, window_bounds = array<i64: 64, 32>}, {pipeline_mode = #tpu.pipeline_mode<synchronous>, transform_indices = @transform_1, window_bounds = array<i64: 32, 128>}, {transform_indices = @transform_2, window_bounds = array<i64: 64, 128>}]} {
    %c0 = arith.constant 0 : index
    %c0_0 = arith.constant 0 : index
    %0 = vector.load %arg1[%c0, %c0_0] : memref<64x32xf32, #tpu.memory_space<vmem>>, vector<64x32xf32>
    %c0_1 = arith.constant 0 : index
    %c0_2 = arith.constant 0 : index
    %1 = vector.load %arg2[%c0_1, %c0_2] : memref<32x128xf32, #tpu.memory_space<vmem>>, vector<32x128xf32>
    %cst = arith.constant dense<0.000000e+00> : vector<64x128xf32>
    %2 = tpu.matmul %0, %1, %cst {dimension_numbers = #tpu.dot_dimension_numbers<[1], [0], [0], [1], [0, 0, 1, 1], [], []>} : vector<64x32xf32>, vector<32x128xf32>, vector<64x128xf32> -> vector<64x128xf32>
    %c0_3 = arith.constant 0 : index
    %c0_4 = arith.constant 0 : index
    %3 = vector.load %arg3[%c0_3, %c0_4] : memref<64x128xf32, #tpu.memory_space<vmem>>, vector<64x128xf32>
    tpu.vector_store %arg3[%c0_3, %c0_4], %2 {strides = array<i32>} : memref<64x128xf32, #tpu.memory_space<vmem>>, vector<64x128xf32>,
    return
  }
  func.func @transform_0(%arg0: i32) -> (i32, i32) {
    %c0_i32 = arith.constant 0 : i32
    %c0_i32_0 = arith.constant 0 : i32
    return %arg0, %c0_i32 : i32, i32
  }
  func.func @transform_1(%arg0: i32) -> (i32, i32) {
    %c0_i32 = arith.constant 0 : i32
    %c0_i32_0 = arith.constant 0 : i32
    %c0_i32_1 = arith.constant 0 : i32
    return %c0_i32, %c0_i32_0 : i32, i32
  }
  func.func @transform_2(%arg0: i32) -> (i32, i32) {
    %c0_i32 = arith.constant 0 : i32
    %c0_i32_0 = arith.constant 0 : i32
    return %arg0, %c0_i32 : i32, i32
  }
}

</mosaic_0001>

<llo_original>
// kernel: tpu_custom_call.1
$region0: #{tpu_custom_call.1}
  #allocation0 [shape = 'u32[]', space=smem, size = 0x4, offset = 0x4, fixed_abs, tag = 'smem constant byte address 0x4 - core index']
  #allocation1 [shape = 'u32[144,128]{1,0:T(1,128)}', space=vmem, size = 0x12000, scoped, tag = 'internal scratch']
  %s0 = inlined_call_operand.vmem [shape: f32[64,32], index: 0, kind: input, shape index: {}]
  %s1 = inlined_call_operand.vmem [shape: f32[32,128], index: 1, kind: input, shape index: {}]
  %s2 = inlined_call_operand.hbm [shape: f32[64,128], index: 2, kind: output, shape index: {}]
  %s3 = sld [smem:[#allocation0]]
  $region18: #{tpu_custom_call.1} parent=0
    _
  %s5 = ssub.s32 1, %s3
  %s6 = scalar_select 0, %s5, %s3
  $region1: #{tpu_custom_call.1} parent=0
    #allocation2 [shape = 'u8[32768]{0}', space=vmem, size = 0x8000, scoped, tag = 'output window, operand 0, single buffered']
    #allocation3 [shape = 's32[1]{0}', space=sflag, size = 0x4, scoped, tag = 'scoped memory for tpu_custom_call.1']
    %7 = vsyncpa [#allocation3], 0
    // Predicated region
    $region2: #{tpu_custom_call.1} parent=1 // pred_check
      _
    $region3: #{tpu_custom_call.1} parent=1 // pred_check_branch
      %9 = sbr.rel (0) target = $region5
    $region4: #{tpu_custom_call.1} parent=1 // pred_region
      _
    $region5: #{tpu_custom_call.1} parent=1 // pred_fallthru
      _
    // Predicated region
    $region6: #{tpu_custom_call.1} parent=1 // pred_check
      _
    $region7: #{tpu_custom_call.1} parent=1 // pred_check_branch
      %11 = sbr.rel (0) target = $region9
    $region8: #{tpu_custom_call.1} parent=1 // pred_region
      _
    $region9: #{tpu_custom_call.1} parent=1 // pred_fallthru
      _
    %v12 = vld [vmem:[%s0] sm:$0xff]
    %v13 = vld [vmem:[%s0 + $0x8] sm:$0xff]
    %v14 = vld [vmem:[%s0 + $0x10] sm:$0xff]
    %v15 = vld [vmem:[%s0 + $0x18] sm:$0xff]
    %v16 = vld [vmem:[%s0 + $0x20] sm:$0xff]
    %v17 = vld [vmem:[%s0 + $0x28] sm:$0xff]
    %v18 = vld [vmem:[%s0 + $0x30] sm:$0xff]
    %v19 = vld [vmem:[%s0 + $0x38] sm:$0xff]
    %v20 = vld [vmem:[%s1] sm:$0xff]
    %v21 = vld [vmem:[%s1 + $0x8] sm:$0xff]
    %v22 = vld [vmem:[%s1 + $0x10] sm:$0xff]
    %v23 = vld [vmem:[%s1 + $0x18] sm:$0xff]
    %vm24 = vcmask 261120
    %v26 = vsel %vm24, %v12, 0
    %v29 = vsel %vm24, %v13, 0
    %v32 = vsel %vm24, %v14, 0
    %v35 = vsel %vm24, %v15, 0
    %v38 = vsel %vm24, %v16, 0
    %v41 = vsel %vm24, %v17, 0
    %v44 = vsel %vm24, %v18, 0
    %v47 = vsel %vm24, %v19, 0
    %49 = vmatprep.subr.mxu0 0.0
    %50 = vmatpush1.msra.mxu0 %v20
    %51 = vmatprep.subr.mxu0 0.0
    %52 = vmatpush1.msra.mxu0 %v21
    %53 = vmatprep.subr.mxu0 0.0
    %54 = vmatpush1.msra.mxu0 %v22
    %55 = vmatprep.subr.mxu0 0.0
    %56 = vmatpush1.msra.mxu0 %v23
    %57 = vmatprep.subr.mxu0 0.0
    %58 = vmatpush1.msra.mxu0 0.0
    %59 = vmatprep.subr.mxu0 0.0
    %60 = vmatpush1.msra.mxu0 0.0
    %61 = vmatprep.subr.mxu0 0.0
    %62 = vmatpush1.msra.mxu0 0.0
    %63 = vmatprep.subr.mxu0 0.0
    %64 = vmatpush1.msra.mxu0 0.0
    %65 = vmatprep.subr.mxu0 0.0
    %66 = vmatpush1.msra.mxu0 0.0
    %67 = vmatprep.subr.mxu0 0.0
    %68 = vmatpush1.msra.mxu0 0.0
    %69 = vmatprep.subr.mxu0 0.0
    %70 = vmatpush1.msra.mxu0 0.0
    %71 = vmatprep.subr.mxu0 0.0
    %72 = vmatpush1.msra.mxu0 0.0
    %73 = vmatprep.subr.mxu0 0.0
    %74 = vmatpush1.msra.mxu0 0.0
    %75 = vmatprep.subr.mxu0 0.0
    %76 = vmatpush1.msra.mxu0 0.0
    %77 = vmatprep.subr.mxu0 0.0
    %78 = vmatpush1.msra.mxu0 0.0
    %79 = vmatprep.subr.mxu0 0.0
    %80 = vmatpush1.msra.mxu0 0.0
    %81 = vmatprep.subr.mxu0 0.0
    %82 = vmatpush1.msra.mxu0 0.0
    %83 = vmatprep.subr.mxu0 0.0
    %84 = vmatpush1.msra.mxu0 0.0
    %85 = vmatprep.subr.mxu0 0.0
    %86 = vmatpush1.msra.mxu0 0.0
    %87 = vmatprep.subr.mxu0 0.0
    %88 = vmatpush1.msra.mxu0 0.0
    %89 = vmatprep.subr.mxu0 0.0
    %90 = vmatpush1.msra.mxu0 0.0
    %91 = vmatprep.subr.mxu0 0.0
    %92 = vmatpush1.msra.mxu0 0.0
    %93 = vmatprep.subr.mxu0 0.0
    %94 = vmatpush1.msra.mxu0 0.0
    %95 = vmatprep.subr.mxu0 0.0
    %96 = vmatpush1.msra.mxu0 0.0
    %97 = vmatprep.subr.mxu0 0.0
    %98 = vmatpush1.msra.mxu0 0.0
    %99 = vmatprep.subr.mxu0 0.0
    %100 = vmatpush1.msra.mxu0 0.0
    %101 = vmatprep.subr.mxu0 0.0
    %102 = vmatpush1.msra.mxu0 0.0
    %103 = vmatprep.subr.mxu0 0.0
    %104 = vmatpush1.msra.mxu0 0.0
    %105 = vmatprep.subr.mxu0 0.0
    %106 = vmatpush1.msra.mxu0 0.0
    %107 = vmatprep.subr.mxu0 0.0
    %108 = vmatpush1.msra.mxu0 0.0
    %109 = vmatprep.subr.mxu0 0.0
    %110 = vmatpush1.msra.mxu0 0.0
    %111 = vmatprep.subr.mxu0 0.0
    %112 = vmatpush1.msra.mxu0 0.0
    %113 = vmatprep.mubr.f32.mxu0 0.0
    %114 = vmatmul.mubr.f32.gmra.mrb[0].mxu0 %v26
    %v115 = vpop.f32.mrb[0].mxu0
    %v116 = vadd.f32 0.0, %v115
    %v117 = vpop.f32.mrb[0].mxu0
    %118 = vmatprep.mubr.f32.mxu0 0.0
    %119 = vmatmul.mubr.f32.gmra.mrb[0].mxu0 %v29
    %v120 = vpop.f32.mrb[0].mxu0
    %v121 = vadd.f32 0.0, %v120
    %v122 = vpop.f32.mrb[0].mxu0
    %123 = vmatprep.mubr.f32.mxu0 0.0
    %124 = vmatmul.mubr.f32.gmra.mrb[0].mxu0 %v32
    %v125 = vpop.f32.mrb[0].mxu0
    %v126 = vadd.f32 0.0, %v125
    %v127 = vpop.f32.mrb[0].mxu0
    %128 = vmatprep.mubr.f32.mxu0 0.0
    %129 = vmatmul.mubr.f32.gmra.mrb[0].mxu0 %v35
    %v130 = vpop.f32.mrb[0].mxu0
    %v131 = vadd.f32 0.0, %v130
    %v132 = vpop.f32.mrb[0].mxu0
    %133 = vmatprep.mubr.f32.mxu0 0.0
    %134 = vmatmul.mubr.f32.gmra.mrb[0].mxu0 %v38
    %v135 = vpop.f32.mrb[0].mxu0
    %v136 = vadd.f32 0.0, %v135
    %v137 = vpop.f32.mrb[0].mxu0
    %138 = vmatprep.mubr.f32.mxu0 0.0
    %139 = vmatmul.mubr.f32.gmra.mrb[0].mxu0 %v41
    %v140 = vpop.f32.mrb[0].mxu0
    %v141 = vadd.f32 0.0, %v140
    %v142 = vpop.f32.mrb[0].mxu0
    %143 = vmatprep.mubr.f32.mxu0 0.0
    %144 = vmatmul.mubr.f32.gmra.mrb[0].mxu0 %v44
    %v145 = vpop.f32.mrb[0].mxu0
    %v146 = vadd.f32 0.0, %v145
    %v147 = vpop.f32.mrb[0].mxu0
    %148 = vmatprep.mubr.f32.mxu0 0.0
    %149 = vmatmul.mubr.f32.gmra.mrb[0].mxu0 %v47
    %v150 = vpop.f32.mrb[0].mxu0
    %v151 = vadd.f32 0.0, %v150
    %v152 = vpop.f32.mrb[0].mxu0
    %153 = vdwg.mxu0
    %154 = vst [vmem:[#allocation2] sm:$0xff] %v116
    %155 = vst [vmem:[#allocation2 + $0x8] sm:$0xff] %v121
    %156 = vst [vmem:[#allocation2 + $0x10] sm:$0xff] %v126
    %157 = vst [vmem:[#allocation2 + $0x18] sm:$0xff] %v131
    %158 = vst [vmem:[#allocation2 + $0x20] sm:$0xff] %v136
    %159 = vst [vmem:[#allocation2 + $0x28] sm:$0xff] %v141
    %160 = vst [vmem:[#allocation2 + $0x30] sm:$0xff] %v146
    %161 = vst [vmem:[#allocation2 + $0x38] sm:$0xff] %v151
    // Predicated region
    $region10: #{tpu_custom_call.1} parent=1 // pred_check
      _
    $region11: #{tpu_custom_call.1} parent=1 // pred_check_branch
      %163 = sbr.rel (0) target = $region13
    $region12: #{tpu_custom_call.1} parent=1 // pred_region
      %s165 = ssub.s32 1024, 1024
      %166 = vsyncadd [#allocation3], %s165
      %s167 = sshll.u32 [#allocation2], 4
      %s168 = int_to_ptr.vmem [resolvable:$true] %s167
      %173 = dma.vmem_to_hbm [thread:$0]  %s168, 1024, %s2, [#allocation3], 128, 128, 8
    $region13: #{tpu_custom_call.1} parent=1 // pred_fallthru
      _
    // Predicated region
    $region14: #{tpu_custom_call.1} parent=1 // pred_check
      _
    $region15: #{tpu_custom_call.1} parent=1 // pred_check_branch
      %175 = sbr.rel (0) target = $region17
    $region16: #{tpu_custom_call.1} parent=1 // pred_region
      %176 = dma.done [#allocation3], 1024
    $region17: #{tpu_custom_call.1} parent=1 // pred_fallthru
      _
    %177 = vsyncpa [#allocation3], 1

</llo_original>
